<compile_context>
chip_gen: v7x
topology: tpu7x:2x2x1
jax: 0.10.0
libtpu: 0.0.40
codegen_flags: <defaults>
</compile_context>

<pallas_src>
import jax
import jax.numpy as jnp
from jax.experimental import pallas as pl
from jax.experimental.pallas import tpu as pltpu


# --------------------------------------------------------------------------
# Kernels
# --------------------------------------------------------------------------
def _mlp_kernel_resident(x_ref, w1_ref, b1_ref, w2_ref, b2_ref, o_ref):
    """Full hidden dim per step (nk == 1): no accumulator scratch needed."""
    h = jnp.dot(x_ref[...], w1_ref[...], preferred_element_type=jnp.float32)
    h = h + b1_ref[...].astype(jnp.float32)
    h = h * jax.nn.sigmoid(h)                       # SiLU in f32
    out = jnp.dot(h.astype(w2_ref.dtype), w2_ref[...],
                  preferred_element_type=jnp.float32)
    o_ref[...] = (out + b2_ref[...].astype(jnp.float32)).astype(o_ref.dtype)


def _mlp_kernel_ksplit(x_ref, w1_ref, b1_ref, w2_ref, b2_ref, o_ref, acc_ref):
    """Hidden dim tiled (nk > 1): accumulate partial products of GEMM2 in f32."""
    k = pl.program_id(2)

    @pl.when(k == 0)
    def _():
        acc_ref[...] = jnp.zeros_like(acc_ref)

    # First linear, K-column slice: (tb, in_dim) @ (in_dim, tk) -> f32
    h = jnp.dot(x_ref[...], w1_ref[...], preferred_element_type=jnp.float32)
    h = h + b1_ref[...].astype(jnp.float32)
    h = h * jax.nn.sigmoid(h)                       # SiLU in f32
    # Second linear partial product: (tb, tk) @ (tk, tn), accumulate in f32.
    acc_ref[...] += jnp.dot(h.astype(w2_ref.dtype), w2_ref[...],
                            preferred_element_type=jnp.float32)

    @pl.when(k == pl.num_programs(2) - 1)
    def _():
        o_ref[...] = (acc_ref[...] + b2_ref[...].astype(jnp.float32)
                      ).astype(o_ref.dtype)


# --------------------------------------------------------------------------
# Wrapper / tiling policy
# --------------------------------------------------------------------------
def _round_up(x, m):
    return pl.cdiv(x, m) * m


def _vmem_capacity_bytes():
    """Per-core VMEM capacity (generation-aware); conservative fallback."""
    try:
        info = pltpu.get_tpu_info()
        cap = getattr(info, "vmem_capacity_bytes", None)
        if cap:
            return int(cap)
    except Exception:
        pass
    return 64 * 1024 * 1024   # v7x per-TC size: safe lower bound everywhere


def mlp_embedding(x, w1, b1, w2, b2, *, block_b=None, block_k=None,
                  block_n=None, vmem_budget_frac=0.85):
    """Fused MLPEmbedding forward.

    Args:
      x:  (B, in_dim)
      w1: (in_dim, embed_dim)     b1: (embed_dim,) or (1, embed_dim)
      w2: (embed_dim, embed_dim)  b2: (embed_dim,) or (1, embed_dim)
    Returns:
      (B, embed_dim) array with x.dtype.
    """
    B, in_dim = x.shape
    embed_dim = w1.shape[1]
    assert w1.shape == (in_dim, embed_dim)
    assert w2.shape == (embed_dim, embed_dim)
    b1 = b1.reshape(1, embed_dim)
    b2 = b2.reshape(1, embed_dim)

    x_b = jnp.dtype(x.dtype).itemsize
    w_b = jnp.dtype(w2.dtype).itemsize
    bb1 = jnp.dtype(b1.dtype).itemsize
    bb2 = jnp.dtype(b2.dtype).itemsize

    # Sublane-aligned batch granularity: 8 (f32) / 16 (bf16) / 32 (8-bit).
    sub = 8 * max(1, 4 // x_b)

    vmem_cap = _vmem_capacity_bytes()
    budget = int(vmem_budget_frac * vmem_cap)
    lane_ok = (embed_dim % 128 == 0)

    # ---------------- N tiling (output columns of the second GEMM) ----------
    if (block_n is not None and lane_ok
            and embed_dim % block_n == 0 and block_n % 128 == 0):
        tn = block_n
    else:
        tn = embed_dim
        # Megacore helper (v7x has 2 TCs/chip): if the batch yields a single
        # tile, split N in two so both cores get work.  Only the tiny first
        # GEMM (tb * in_dim * embed_dim) is recomputed per N tile.
        if (block_n is None and lane_ok and embed_dim >= 1024
                and embed_dim % 256 == 0 and _round_up(B, sub) <= 256):
            tn = embed_dim // 2
    nn = embed_dim // tn

    # ---------------- VMEM footprint model ---------------------------------
    def vmem_need(tb, tk, weight_bufs):
        n = 2 * tb * in_dim * x_b                 # x tiles (double-buffered)
        n += weight_bufs * in_dim * tk * w_b      # w1
        n += weight_bufs * tk * bb1               # b1
        n += weight_bufs * tk * tn * w_b          # w2
        n += weight_bufs * tn * bb2               # b2
        n += 2 * tb * tn * x_b                    # out tiles (double-buffered)
        if tk != embed_dim:
            n += tb * tn * 4                      # f32 accumulator scratch
        return n

    # ---------------- K tiling (hidden dim between the linears) ------------
    tb_probe = _round_up(min(block_b or 256, _round_up(B, sub)), sub)
    single_buffer_weights = False

    if block_k is not None:
        if block_k == embed_dim or (lane_ok and embed_dim % block_k == 0
                                    and block_k % 128 == 0):
            tk = block_k
        else:
            tk = embed_dim
    else:
        # Keep w2 resident whenever the full plan fits the per-core budget:
        # resident weights are DMAed once (grid-invariant index_map) instead of
        # re-streaming embed_dim^2 bytes per batch tile.
        if (not lane_ok) or vmem_need(tb_probe, embed_dim, 2) <= budget:
            tk = embed_dim
        elif nn == 1 and vmem_need(tb_probe, embed_dim, 1) <= budget:
            # Single-buffer the invariant weights (pl.Buffered(1)) to make
            # residency fit (mainly v7x's 64 MiB/TC at large embed_dim).
            tk = embed_dim
            single_buffer_weights = True
        else:
            # Unavoidable streaming of w2: prefer deep K tiles (v6e/v7x MXU is
            # 256-deep; 128 only makes sense as the last resort / v5e).
            tk = embed_dim
            for cand in (512, 256, 128):
                if embed_dim % cand == 0:
                    tk = cand
                    break
    nk = embed_dim // tk
    weight_bufs = 1 if single_buffer_weights else 2

    # ---------------- batch tiling ------------------------------------------
    if block_b is not None:
        tb_target = block_b
    elif nk == 1:
        tb_target = 256
    else:
        # Streamed w2: larger batch tiles amortize the per-tile re-read of w2
        # (arithmetic intensity ~ 2*tb/bytes_per_weight) and per-step overhead.
        tb_target = 512 if vmem_cap <= (80 << 20) else 1024
    tb = _round_up(min(tb_target, _round_up(B, sub)), sub)
    while tb > sub and vmem_need(tb, tk, weight_bufs) > budget:
        tb = _round_up(max(sub, tb // 2), sub)

    B_pad = _round_up(B, tb)
    if B_pad != B:
        x = jnp.pad(x, ((0, B_pad - B), (0, 0)))
    nb = B_pad // tb

    # ---------------- VMEM limit: real buffer sum, never under-clamped ------
    need = vmem_need(tb, tk, weight_bufs)
    vmem_limit = int(min(max(need + (4 << 20), 32 << 20), budget))
    vmem_limit = max(vmem_limit, need)

    # ---------------- specs / grid -------------------------------------------
    wkw = dict(pipeline_mode=pl.Buffered(1)) if single_buffer_weights else {}

    if nk == 1:
        grid = (nb, nn)
        kernel = _mlp_kernel_resident
        in_specs = [
            pl.BlockSpec((tb, in_dim), lambda i, j: (i, 0)),                 # x
            pl.BlockSpec((in_dim, embed_dim), lambda i, j: (0, 0), **wkw),   # w1
            pl.BlockSpec((1, embed_dim), lambda i, j: (0, 0), **wkw),        # b1
            pl.BlockSpec((embed_dim, tn), lambda i, j: (0, j),
                         **(wkw if nn == 1 else {})),                        # w2
            pl.BlockSpec((1, tn), lambda i, j: (0, j),
                         **(wkw if nn == 1 else {})),                        # b2
        ]
        out_specs = pl.BlockSpec((tb, tn), lambda i, j: (i, j))
        scratch_shapes = []
        semantics = ("parallel", "parallel")
    else:
        grid = (nb, nn, nk)
        kernel = _mlp_kernel_ksplit
        in_specs = [
            pl.BlockSpec((tb, in_dim), lambda i, j, k: (i, 0)),              # x
            pl.BlockSpec((in_dim, tk), lambda i, j, k: (0, k)),              # w1
            pl.BlockSpec((1, tk), lambda i, j, k: (0, k)),                   # b1
            pl.BlockSpec((tk, tn), lambda i, j, k: (k, j)),                  # w2
            pl.BlockSpec((1, tn), lambda i, j, k: (0, j)),                   # b2
        ]
        out_specs = pl.BlockSpec((tb, tn), lambda i, j, k: (i, j))
        scratch_shapes = [pltpu.VMEM((tb, tn), jnp.float32)]
        semantics = ("parallel", "parallel", "arbitrary")

    out = pl.pallas_call(
        kernel,
        out_shape=jax.ShapeDtypeStruct((B_pad, embed_dim), x.dtype),
        grid_spec=pltpu.PrefetchScalarGridSpec(
            num_scalar_prefetch=0,
            grid=grid,
            in_specs=in_specs,
            out_specs=out_specs,
            scratch_shapes=scratch_shapes,
        ),
        compiler_params=pltpu.CompilerParams(
            dimension_semantics=semantics,
            vmem_limit_bytes=vmem_limit,
        ),
    )(x, w1, b1, w2, b2)

    return out[:B] if B_pad != B else out


# --------------------------------------------------------------------------
# Params / reference
# --------------------------------------------------------------------------
def init_params(key, in_dim, embed_dim, dtype=jnp.float32):
    """Mimics PyTorch nn.Linear default init (uniform +/- 1/sqrt(fan_in))."""
    k1, k2, k3, k4 = jax.random.split(key, 4)
    bound1 = 1.0 / (in_dim ** 0.5)
    bound2 = 1.0 / (embed_dim ** 0.5)
    w1 = jax.random.uniform(k1, (in_dim, embed_dim), dtype, -bound1, bound1)
    b1 = jax.random.uniform(k2, (1, embed_dim), dtype, -bound1, bound1)
    w2 = jax.random.uniform(k3, (embed_dim, embed_dim), dtype, -bound2, bound2)
    b2 = jax.random.uniform(k4, (1, embed_dim), dtype, -bound2, bound2)
    return w1, b1, w2, b2


def mlp_embedding_ref(x, w1, b1, w2, b2):
    """Pure-JAX reference matching the kernel's mixed-precision path.

    NOTE: h is cast to w2.dtype before the second matmul (matches the kernel);
    with bf16 weights this is lower precision than a pure-f32 PyTorch module.
    """
    h = jnp.dot(x, w1, preferred_element_type=jnp.float32)
    h = h + b1.reshape(1, -1).astype(jnp.float32)
    h = h * jax.nn.sigmoid(h)
    out = jnp.dot(h.astype(w2.dtype), w2, preferred_element_type=jnp.float32)
    out = out + b2.reshape(1, -1).astype(jnp.float32)
    return out.astype(x.dtype)


if __name__ == "__main__":
    key = jax.random.PRNGKey(0)

    # ---- test 1: f32, resident weights, no accumulator (nk == 1) -----------
    B, in_dim, embed_dim = 8, 32, 128
    kx, kp = jax.random.split(key)
    x = jax.random.normal(kx, (B, in_dim), dtype=jnp.float32)
    w1, b1, w2, b2 = init_params(kp, in_dim, embed_dim, jnp.float32)

    out = jax.block_until_ready(mlp_embedding(x, w1, b1, w2, b2))
    ref = mlp_embedding_ref(x, w1, b1, w2, b2)
    assert out.shape == (B, embed_dim), out.shape
    assert jnp.allclose(out, ref, atol=1e-5, rtol=1e-5), "f32 mismatch vs reference"

    # ---- test 2: bf16, non-aligned batch, K-tiled second GEMM (nk > 1) -----
    B2, in2, ed2 = 10, 32, 256
    kx2, kp2 = jax.random.split(kp)
    x2 = jax.random.normal(kx2, (B2, in2), dtype=jnp.float32).astype(jnp.bfloat16)
    p2 = init_params(kp2, in2, ed2, jnp.float32)
    w1b, b1b, w2b, b2b = (a.astype(jnp.bfloat16) for a in p2)

    out2 = jax.block_until_ready(
        mlp_embedding(x2, w1b, b1b, w2b, b2b, block_k=128))
    ref2 = mlp_embedding_ref(x2, w1b, b1b, w2b, b2b)
    assert out2.shape == (B2, ed2), out2.shape
    assert jnp.allclose(out2.astype(jnp.float32), ref2.astype(jnp.float32),
                        atol=5e-2, rtol=5e-2), "bf16 mismatch vs reference"

    # ---- test 3: f32, N-split output columns (megacore-style path) ---------
    B3, in3, ed3 = 4, 32, 256
    kx3, kp3 = jax.random.split(kp2)
    x3 = jax.random.normal(kx3, (B3, in3), dtype=jnp.float32)
    w13, b13, w23, b23 = init_params(kp3, in3, ed3, jnp.float32)

    out3 = jax.block_until_ready(
        mlp_embedding(x3, w13, b13, w23, b23, block_n=128))
    ref3 = mlp_embedding_ref(x3, w13, b13, w23, b23)
    assert out3.shape == (B3, ed3), out3.shape
    assert jnp.allclose(out3, ref3, atol=1e-5, rtol=1e-5), "N-split mismatch vs reference"

    print("KERNEL_OK")
</pallas_src>

<mosaic_0001>
module attributes {stable_mosaic.version = 11 : i64} {
  func.func @_mlp_kernel_resident(%arg0: i32, %arg1: i32, %arg2: memref<8x32xf32, #tpu.memory_space<vmem>>, %arg3: memref<32x128xf32, #tpu.memory_space<vmem>>, %arg4: memref<1x128xf32, #tpu.memory_space<vmem>>, %arg5: memref<128x128xf32, #tpu.memory_space<vmem>>, %arg6: memref<1x128xf32, #tpu.memory_space<vmem>>, %arg7: memref<8x128xf32, #tpu.memory_space<vmem>>) attributes {dimension_semantics = [#tpu.dimension_semantics<parallel>, #tpu.dimension_semantics<parallel>], iteration_bounds = array<i64: 1, 1>, scalar_prefetch = 0 : i64, scratch_operands = 0 : i64, tpu.core_type = #tpu.core_type<tc>, window_params = [{transform_indices = @transform_0, window_bounds = array<i64: 8, 32>}, {pipeline_mode = #tpu.pipeline_mode<synchronous>, transform_indices = @transform_1, window_bounds = array<i64: 32, 128>}, {pipeline_mode = #tpu.pipeline_mode<synchronous>, transform_indices = @transform_2, window_bounds = array<i64: 1, 128>}, {transform_indices = @transform_3, window_bounds = array<i64: 128, 128>}, {transform_indices = @transform_4, window_bounds = array<i64: 1, 128>}, {transform_indices = @transform_5, window_bounds = array<i64: 8, 128>}]} {
    %c0 = arith.constant 0 : index
    %c0_0 = arith.constant 0 : index
    %0 = vector.load %arg2[%c0, %c0_0] : memref<8x32xf32, #tpu.memory_space<vmem>>, vector<8x32xf32>
    %c0_1 = arith.constant 0 : index
    %c0_2 = arith.constant 0 : index
    %1 = vector.load %arg3[%c0_1, %c0_2] : memref<32x128xf32, #tpu.memory_space<vmem>>, vector<32x128xf32>
    %cst = arith.constant dense<0.000000e+00> : vector<8x128xf32>
    %2 = tpu.matmul %0, %1, %cst {dimension_numbers = #tpu.dot_dimension_numbers<[1], [0], [0], [1], [0, 0, 1, 1], [], []>} : vector<8x32xf32>, vector<32x128xf32>, vector<8x128xf32> -> vector<8x128xf32>
    %c0_3 = arith.constant 0 : index
    %c0_4 = arith.constant 0 : index
    %3 = vector.load %arg4[%c0_3, %c0_4] : memref<1x128xf32, #tpu.memory_space<vmem>>, vector<1x128xf32>
    %4 = vector.broadcast %3 : vector<1x128xf32> to vector<8x128xf32>
    %5 = arith.addf %2, %4 : vector<8x128xf32>
    %6 = arith.negf %5 : vector<8x128xf32>
    %7 = math.exp %6 : vector<8x128xf32>
    %cst_5 = arith.constant 1.000000e+00 : f32
    %8 = vector.broadcast %cst_5 : f32 to vector<8x128xf32>
    %9 = arith.addf %8, %7 : vector<8x128xf32>
    %10 = arith.divf %8, %9 : vector<8x128xf32>
    %11 = arith.mulf %5, %10 : vector<8x128xf32>
    %c0_6 = arith.constant 0 : index
    %c0_7 = arith.constant 0 : index
    %12 = vector.load %arg5[%c0_6, %c0_7] : memref<128x128xf32, #tpu.memory_space<vmem>>, vector<128x128xf32>
    %cst_8 = arith.constant dense<0.000000e+00> : vector<8x128xf32>
    %13 = tpu.matmul %11, %12, %cst_8 {dimension_numbers = #tpu.dot_dimension_numbers<[1], [0], [0], [1], [0, 0, 1, 1], [], []>} : vector<8x128xf32>, vector<128x128xf32>, vector<8x128xf32> -> vector<8x128xf32>
    %c0_9 = arith.constant 0 : index
    %c0_10 = arith.constant 0 : index
    %14 = vector.load %arg6[%c0_9, %c0_10] : memref<1x128xf32, #tpu.memory_space<vmem>>, vector<1x128xf32>
    %15 = vector.broadcast %14 : vector<1x128xf32> to vector<8x128xf32>
    %16 = arith.addf %13, %15 : vector<8x128xf32>
    %c0_11 = arith.constant 0 : index
    %c0_12 = arith.constant 0 : index
    %17 = vector.load %arg7[%c0_11, %c0_12] : memref<8x128xf32, #tpu.memory_space<vmem>>, vector<8x128xf32>
    tpu.vector_store %arg7[%c0_11, %c0_12], %16 {strides = array<i32>} : memref<8x128xf32, #tpu.memory_space<vmem>>, vector<8x128xf32>,
    return
  }
  func.func @transform_0(%arg0: i32, %arg1: i32) -> (i32, i32) {
    %c0_i32 = arith.constant 0 : i32
    %c0_i32_0 = arith.constant 0 : i32
    return %arg0, %c0_i32 : i32, i32
  }
  func.func @transform_1(%arg0: i32, %arg1: i32) -> (i32, i32) {
    %c0_i32 = arith.constant 0 : i32
    %c0_i32_0 = arith.constant 0 : i32
    %c0_i32_1 = arith.constant 0 : i32
    return %c0_i32, %c0_i32_0 : i32, i32
  }
  func.func @transform_2(%arg0: i32, %arg1: i32) -> (i32, i32) {
    %c0_i32 = arith.constant 0 : i32
    %c0_i32_0 = arith.constant 0 : i32
    %c0_i32_1 = arith.constant 0 : i32
    return %c0_i32, %c0_i32_0 : i32, i32
  }
  func.func @transform_3(%arg0: i32, %arg1: i32) -> (i32, i32) {
    %c0_i32 = arith.constant 0 : i32
    %c0_i32_0 = arith.constant 0 : i32
    return %c0_i32, %arg1 : i32, i32
  }
  func.func @transform_4(%arg0: i32, %arg1: i32) -> (i32, i32) {
    %c0_i32 = arith.constant 0 : i32
    %c0_i32_0 = arith.constant 0 : i32
    return %c0_i32, %arg1 : i32, i32
  }
  func.func @transform_5(%arg0: i32, %arg1: i32) -> (i32, i32) {
    %c0_i32 = arith.constant 0 : i32
    return %arg0, %arg1 : i32, i32
  }
}

</mosaic_0001>

<llo_original>
// kernel: tpu_custom_call.1
$region0: #{tpu_custom_call.1}
  #allocation0 [shape = 'u32[]', space=smem, size = 0x4, offset = 0x4, fixed_abs, tag = 'smem constant byte address 0x4 - core index']
  #allocation1 [shape = 'u32[144,128]{1,0:T(1,128)}', space=vmem, size = 0x12000, scoped, tag = 'internal scratch']
  %s0 = inlined_call_operand.hbm [shape: f32[8,32], index: 0, kind: input, shape index: {}]
  %s1 = inlined_call_operand.hbm [shape: f32[32,128], index: 1, kind: input, shape index: {}]
  %s2 = inlined_call_operand.vmem [shape: f32[1,128], index: 2, kind: input, shape index: {}]
  %s3 = inlined_call_operand.hbm [shape: f32[128,128], index: 3, kind: input, shape index: {}]
  %s4 = inlined_call_operand.vmem [shape: f32[1,128], index: 4, kind: input, shape index: {}]
  %s5 = inlined_call_operand.hbm [shape: f32[8,128], index: 5, kind: output, shape index: {}]
  %s6 = sld [smem:[#allocation0]]
  $region42: #{tpu_custom_call.1} parent=0
    _
  %s8 = ssub.s32 1, %s6
  %s9 = scalar_select 0, %s8, %s6
  $region1: #{tpu_custom_call.1} parent=0
    #allocation2 [shape = 'u8[4096]{0}', space=vmem, size = 0x1000, scoped, tag = 'input window, operand 0, single buffered']
    #allocation3 [shape = 's32[1]{0}', space=sflag, size = 0x4, scoped, tag = 'scoped memory for tpu_custom_call.1']
    #allocation4 [shape = 's32[1]{0}', space=sflag, size = 0x4, scoped, tag = 'scoped memory for tpu_custom_call.1']
    #allocation5 [shape = 'u8[16384]{0}', space=vmem, size = 0x4000, scoped, tag = 'input window, operand 1, single buffered']
    #allocation6 [shape = 's32[1]{0}', space=sflag, size = 0x4, scoped, tag = 'scoped memory for tpu_custom_call.1']
    #allocation7 [shape = 'u8[65536]{0}', space=vmem, size = 0x10000, scoped, tag = 'input window, operand 3, single buffered']
    #allocation8 [shape = 'u8[4096]{0}', space=vmem, size = 0x1000, scoped, tag = 'output window, operand 0, single buffered']
    %10 = vsyncpa [#allocation3], 0
    %11 = vsyncpa [#allocation6], 0
    %12 = vsyncpa [#allocation4], 0
    // Predicated region
    $region2: #{tpu_custom_call.1} parent=1 // pred_check
      _
    $region3: #{tpu_custom_call.1} parent=1 // pred_check_branch
      %14 = sbr.rel (0) target = $region5
    $region4: #{tpu_custom_call.1} parent=1 // pred_region
      %s16 = ssub.s32 128, 128
      %17 = vsyncadd [#allocation3], %s16
      %s19 = sshll.u32 [#allocation2], 4
      %s20 = int_to_ptr.vmem [resolvable:$true] %s19
      %22 = dma.hbm_to_vmem [thread:$0]  %s0, 128, %s20, [#allocation3]
    $region5: #{tpu_custom_call.1} parent=1 // pred_fallthru
      _
    // Predicated region
    $region6: #{tpu_custom_call.1} parent=1 // pred_check
      _
    $region7: #{tpu_custom_call.1} parent=1 // pred_check_branch
      %24 = sbr.rel (0) target = $region9
    $region8: #{tpu_custom_call.1} parent=1 // pred_region
      %s26 = ssub.s32 512, 512
      %27 = vsyncadd [#allocation6], %s26
      %s28 = sshll.u32 [#allocation5], 4
      %s29 = int_to_ptr.vmem [resolvable:$true] %s28
      %34 = dma.hbm_to_vmem [thread:$0]  %s1, 512, %s29, [#allocation6], 128, 128, 8
    $region9: #{tpu_custom_call.1} parent=1 // pred_fallthru
      _
    // Predicated region
    $region10: #{tpu_custom_call.1} parent=1 // pred_check
      _
    $region11: #{tpu_custom_call.1} parent=1 // pred_check_branch
      %36 = sbr.rel (0) target = $region13
    $region12: #{tpu_custom_call.1} parent=1 // pred_region
      _
    $region13: #{tpu_custom_call.1} parent=1 // pred_fallthru
      _
    // Predicated region
    $region14: #{tpu_custom_call.1} parent=1 // pred_check
      _
    $region15: #{tpu_custom_call.1} parent=1 // pred_check_branch
      %38 = sbr.rel (0) target = $region17
    $region16: #{tpu_custom_call.1} parent=1 // pred_region
      %s40 = ssub.s32 2048, 2048
      %41 = vsyncadd [#allocation6], %s40
      %s42 = sshll.u32 [#allocation7], 4
      %s43 = int_to_ptr.vmem [resolvable:$true] %s42
      %48 = dma.hbm_to_vmem [thread:$0]  %s3, 2048, %s43, [#allocation6], 128, 128, 8
    $region17: #{tpu_custom_call.1} parent=1 // pred_fallthru
      _
    // Predicated region
    $region18: #{tpu_custom_call.1} parent=1 // pred_check
      _
    $region19: #{tpu_custom_call.1} parent=1 // pred_check_branch
      %50 = sbr.rel (0) target = $region21
    $region20: #{tpu_custom_call.1} parent=1 // pred_region
      _
    $region21: #{tpu_custom_call.1} parent=1 // pred_fallthru
      _
    // Predicated region
    $region22: #{tpu_custom_call.1} parent=1 // pred_check
      _
    $region23: #{tpu_custom_call.1} parent=1 // pred_check_branch
      %52 = sbr.rel (0) target = $region25
    $region24: #{tpu_custom_call.1} parent=1 // pred_region
      %53 = dma.done [#allocation3], 128
    $region25: #{tpu_custom_call.1} parent=1 // pred_fallthru
      _
    // Predicated region
    $region26: #{tpu_custom_call.1} parent=1 // pred_check
      _
    $region27: #{tpu_custom_call.1} parent=1 // pred_check_branch
      %55 = sbr.rel (0) target = $region29
    $region28: #{tpu_custom_call.1} parent=1 // pred_region
      %56 = dma.done [#allocation6], 512
    $region29: #{tpu_custom_call.1} parent=1 // pred_fallthru
      _
    // Predicated region
    $region30: #{tpu_custom_call.1} parent=1 // pred_check
      _
    $region31: #{tpu_custom_call.1} parent=1 // pred_check_branch
      %58 = sbr.rel (0) target = $region33
    $region32: #{tpu_custom_call.1} parent=1 // pred_region
      %59 = dma.done [#allocation6], 2048
    $region33: #{tpu_custom_call.1} parent=1 // pred_fallthru
      _
    %v60 = vld [vmem:[#allocation2] sm:$0xff]
    %v61 = vld [vmem:[#allocation5] sm:$0xff]
    %v62 = vld [vmem:[#allocation5 + $0x8] sm:$0xff]
    %v63 = vld [vmem:[#allocation5 + $0x10] sm:$0xff]
    %v64 = vld [vmem:[#allocation5 + $0x18] sm:$0xff]
    %v65 = vld [vmem:[%s2] sm:$0x1]
    %v67 = vlaneseq
    %v68 = vshrl.u32 %v67, 7
    %v69 = vsub.s32 0, %v68
    %v70 = vrot.slane %v65, %v69
    %vm72 = vcmask 261120
    %v74 = vsel %vm72, %v60, 0
    %76 = vmatprep.subr.mxu0 0.0
    %77 = vmatpush1.msra.mxu0 %v61
    %78 = vmatprep.subr.mxu0 0.0
    %79 = vmatpush1.msra.mxu0 %v62
    %80 = vmatprep.subr.mxu0 0.0
    %81 = vmatpush1.msra.mxu0 %v63
    %82 = vmatprep.subr.mxu0 0.0
    %83 = vmatpush1.msra.mxu0 %v64
    %84 = vmatprep.subr.mxu0 0.0
    %85 = vmatpush1.msra.mxu0 0.0
    %86 = vmatprep.subr.mxu0 0.0
    %87 = vmatpush1.msra.mxu0 0.0
    %88 = vmatprep.subr.mxu0 0.0
    %89 = vmatpush1.msra.mxu0 0.0
    %90 = vmatprep.subr.mxu0 0.0
    %91 = vmatpush1.msra.mxu0 0.0
    %92 = vmatprep.subr.mxu0 0.0
    %93 = vmatpush1.msra.mxu0 0.0
    %94 = vmatprep.subr.mxu0 0.0
    %95 = vmatpush1.msra.mxu0 0.0
    %96 = vmatprep.subr.mxu0 0.0
    %97 = vmatpush1.msra.mxu0 0.0
    %98 = vmatprep.subr.mxu0 0.0
    %99 = vmatpush1.msra.mxu0 0.0
    %100 = vmatprep.subr.mxu0 0.0
    %101 = vmatpush1.msra.mxu0 0.0
    %102 = vmatprep.subr.mxu0 0.0
    %103 = vmatpush1.msra.mxu0 0.0
    %104 = vmatprep.subr.mxu0 0.0
    %105 = vmatpush1.msra.mxu0 0.0
    %106 = vmatprep.subr.mxu0 0.0
    %107 = vmatpush1.msra.mxu0 0.0
    %108 = vmatprep.subr.mxu0 0.0
    %109 = vmatpush1.msra.mxu0 0.0
    %110 = vmatprep.subr.mxu0 0.0
    %111 = vmatpush1.msra.mxu0 0.0
    %112 = vmatprep.subr.mxu0 0.0
    %113 = vmatpush1.msra.mxu0 0.0
    %114 = vmatprep.subr.mxu0 0.0
    %115 = vmatpush1.msra.mxu0 0.0
    %116 = vmatprep.subr.mxu0 0.0
    %117 = vmatpush1.msra.mxu0 0.0
    %118 = vmatprep.subr.mxu0 0.0
    %119 = vmatpush1.msra.mxu0 0.0
    %120 = vmatprep.subr.mxu0 0.0
    %121 = vmatpush1.msra.mxu0 0.0
    %122 = vmatprep.subr.mxu0 0.0
    %123 = vmatpush1.msra.mxu0 0.0
    %124 = vmatprep.subr.mxu0 0.0
    %125 = vmatpush1.msra.mxu0 0.0
    %126 = vmatprep.subr.mxu0 0.0
    %127 = vmatpush1.msra.mxu0 0.0
    %128 = vmatprep.subr.mxu0 0.0
    %129 = vmatpush1.msra.mxu0 0.0
    %130 = vmatprep.subr.mxu0 0.0
    %131 = vmatpush1.msra.mxu0 0.0
    %132 = vmatprep.subr.mxu0 0.0
    %133 = vmatpush1.msra.mxu0 0.0
    %134 = vmatprep.subr.mxu0 0.0
    %135 = vmatpush1.msra.mxu0 0.0
    %136 = vmatprep.subr.mxu0 0.0
    %137 = vmatpush1.msra.mxu0 0.0
    %138 = vmatprep.subr.mxu0 0.0
    %139 = vmatpush1.msra.mxu0 0.0
    %140 = vmatprep.mubr.f32.mxu0 0.0
    %141 = vmatmul.mubr.f32.gmra.mrb[0].mxu0 %v74
    %v142 = vpop.f32.mrb[0].mxu0
    %v143 = vadd.f32 %v70, %v142
    %v144 = vpop.f32.mrb[0].mxu0
    %145 = vdwg.mxu0
    %v146 = vxor.u32 %v143, 2147483648
    %v147 = vmul.f32 %v146, 1.442695
    %v148 = vpow.pop %v147
    %v149 = vadd.f32 %v148, 1.0
    %v150 = vrcp.pop %v149
    %v151 = vmul.f32 1.0, %v150
    %v152 = vmul.f32 %v143, %v151
    %v153 = vld [vmem:[#allocation7] sm:$0xff]
    %v154 = vld [vmem:[#allocation7 + $0x8] sm:$0xff]
    %v155 = vld [vmem:[#allocation7 + $0x10] sm:$0xff]
    %v156 = vld [vmem:[#allocation7 + $0x18] sm:$0xff]
    %v157 = vld [vmem:[#allocation7 + $0x20] sm:$0xff]
    %v158 = vld [vmem:[#allocation7 + $0x28] sm:$0xff]
    %v159 = vld [vmem:[#allocation7 + $0x30] sm:$0xff]
    %v160 = vld [vmem:[#allocation7 + $0x38] sm:$0xff]
    %v161 = vld [vmem:[#allocation7 + $0x40] sm:$0xff]
    %v162 = vld [vmem:[#allocation7 + $0x48] sm:$0xff]
    %v163 = vld [vmem:[#allocation7 + $0x50] sm:$0xff]
    %v164 = vld [vmem:[#allocation7 + $0x58] sm:$0xff]
    %v165 = vld [vmem:[#allocation7 + $0x60] sm:$0xff]
    %v166 = vld [vmem:[#allocation7 + $0x68] sm:$0xff]
    %v167 = vld [vmem:[#allocation7 + $0x70] sm:$0xff]
    %v168 = vld [vmem:[#allocation7 + $0x78] sm:$0xff]
    %v169 = vld [vmem:[%s4] sm:$0x1]
    %v171 = vlaneseq
    %v172 = vshrl.u32 %v171, 7
    %v173 = vsub.s32 0, %v172
    %v174 = vrot.slane %v169, %v173
    %176 = vmatprep.subr.mxu0 0.0
    %177 = vmatpush1.msra.mxu0 %v153
    %178 = vmatprep.subr.mxu0 0.0
    %179 = vmatpush1.msra.mxu0 %v154
    %180 = vmatprep.subr.mxu0 0.0
    %181 = vmatpush1.msra.mxu0 %v155
    %182 = vmatprep.subr.mxu0 0.0
    %183 = vmatpush1.msra.mxu0 %v156
    %184 = vmatprep.subr.mxu0 0.0
    %185 = vmatpush1.msra.mxu0 %v157
    %186 = vmatprep.subr.mxu0 0.0
    %187 = vmatpush1.msra.mxu0 %v158
    %188 = vmatprep.subr.mxu0 0.0
    %189 = vmatpush1.msra.mxu0 %v159
    %190 = vmatprep.subr.mxu0 0.0
    %191 = vmatpush1.msra.mxu0 %v160
    %192 = vmatprep.subr.mxu0 0.0
    %193 = vmatpush1.msra.mxu0 %v161
    %194 = vmatprep.subr.mxu0 0.0
    %195 = vmatpush1.msra.mxu0 %v162
    %196 = vmatprep.subr.mxu0 0.0
    %197 = vmatpush1.msra.mxu0 %v163
    %198 = vmatprep.subr.mxu0 0.0
    %199 = vmatpush1.msra.mxu0 %v164
    %200 = vmatprep.subr.mxu0 0.0
    %201 = vmatpush1.msra.mxu0 %v165
    %202 = vmatprep.subr.mxu0 0.0
    %203 = vmatpush1.msra.mxu0 %v166
    %204 = vmatprep.subr.mxu0 0.0
    %205 = vmatpush1.msra.mxu0 %v167
    %206 = vmatprep.subr.mxu0 0.0
    %207 = vmatpush1.msra.mxu0 %v168
    %208 = vmatprep.subr.mxu0 0.0
    %209 = vmatpush1.msra.mxu0 0.0
    %210 = vmatprep.subr.mxu0 0.0
    %211 = vmatpush1.msra.mxu0 0.0
    %212 = vmatprep.subr.mxu0 0.0
    %213 = vmatpush1.msra.mxu0 0.0
    %214 = vmatprep.subr.mxu0 0.0
    %215 = vmatpush1.msra.mxu0 0.0
    %216 = vmatprep.subr.mxu0 0.0
    %217 = vmatpush1.msra.mxu0 0.0
    %218 = vmatprep.subr.mxu0 0.0
    %219 = vmatpush1.msra.mxu0 0.0
    %220 = vmatprep.subr.mxu0 0.0
    %221 = vmatpush1.msra.mxu0 0.0
    %222 = vmatprep.subr.mxu0 0.0
    %223 = vmatpush1.msra.mxu0 0.0
    %224 = vmatprep.subr.mxu0 0.0
    %225 = vmatpush1.msra.mxu0 0.0
    %226 = vmatprep.subr.mxu0 0.0
    %227 = vmatpush1.msra.mxu0 0.0
    %228 = vmatprep.subr.mxu0 0.0
    %229 = vmatpush1.msra.mxu0 0.0
    %230 = vmatprep.subr.mxu0 0.0
    %231 = vmatpush1.msra.mxu0 0.0
    %232 = vmatprep.subr.mxu0 0.0
    %233 = vmatpush1.msra.mxu0 0.0
    %234 = vmatprep.subr.mxu0 0.0
    %235 = vmatpush1.msra.mxu0 0.0
    %236 = vmatprep.subr.mxu0 0.0
    %237 = vmatpush1.msra.mxu0 0.0
    %238 = vmatprep.subr.mxu0 0.0
    %239 = vmatpush1.msra.mxu0 0.0
    %240 = vmatprep.mubr.f32.mxu0 0.0
    %241 = vmatmul.mubr.f32.gmra.mrb[0].mxu0 %v152
    %v242 = vpop.f32.mrb[0].mxu0
    %v243 = vadd.f32 %v174, %v242
    %v244 = vpop.f32.mrb[0].mxu0
    %245 = vdwg.mxu0
    %246 = vst [vmem:[#allocation8] sm:$0xff] %v243
    // Predicated region
    $region34: #{tpu_custom_call.1} parent=1 // pred_check
      _
    $region35: #{tpu_custom_call.1} parent=1 // pred_check_branch
      %248 = sbr.rel (0) target = $region37
    $region36: #{tpu_custom_call.1} parent=1 // pred_region
      %s250 = ssub.s32 128, 128
      %251 = vsyncadd [#allocation4], %s250
      %s253 = sshll.u32 [#allocation8], 4
      %s254 = int_to_ptr.vmem [resolvable:$true] %s253
      %256 = dma.vmem_to_hbm [thread:$0]  %s254, 128, %s5, [#allocation4]
    $region37: #{tpu_custom_call.1} parent=1 // pred_fallthru
      _
    // Predicated region
    $region38: #{tpu_custom_call.1} parent=1 // pred_check
      _
    $region39: #{tpu_custom_call.1} parent=1 // pred_check_branch
      %258 = sbr.rel (0) target = $region41
    $region40: #{tpu_custom_call.1} parent=1 // pred_region
      %259 = dma.done [#allocation4], 128
    $region41: #{tpu_custom_call.1} parent=1 // pred_fallthru
      _
    %260 = vsyncpa [#allocation3], 1
    %261 = vsyncpa [#allocation6], 1
    %262 = vsyncpa [#allocation4], 1

</llo_original>
